<compile_context>
chip_gen: v7x
topology: tpu7x:2x2x1
jax: 0.10.0
libtpu: 0.0.40
codegen_flags: <defaults>
</compile_context>

<pallas_src>
import functools

import jax
import jax.numpy as jnp
from jax.experimental import pallas as pl
from jax.experimental.pallas import tpu as pltpu


def _round_up(x, m):
    return (x + m - 1) // m * m


_KNN_CHUNK = 32     # sublane chunk consumed straight out of the MXU (stays in vregs)
_KNN_TM_MAX = 2048  # face tile (sublanes) per grid step
_KNN_TP_MAX = 1024  # point tile (lanes) per grid step


# --------------------------------------------------------------------------
# Kernel 1: exact 1-NN (replaces pytorch3d ops.knn_points with K=1).
#
# Per grid point (i, m):
#   x_ref  : [8, tp]   rows 0..2 = x^T, row 3 = 1.0        (points in lanes)
#   c_ref  : [tm, 8]   cols 0..2 = -2*c, col 3 = ||c||^2   (faces in sublanes)
#   x2_ref : [1, tp]   ||x||^2
# so  dot(c_chunk, x)[f, p] = ||c_f||^2 - 2 c_f . x_p = d2[f, p] - ||x_p||^2,
# and ||x_p||^2 (constant along faces) is added only at the last face tile.
# dist_ref / idx_ref double as the running (min, argmin) accumulator — their
# index_map ignores m, so the blocks stay resident across the face axis.
# --------------------------------------------------------------------------
def _knn_kernel(x_ref, c_ref, x2_ref, dist_ref, idx_ref, *, chunk):
    m = pl.program_id(1)
    last = pl.num_programs(1) - 1
    tm = c_ref.shape[0]
    tp = x_ref.shape[1]
    n_chunks = tm // chunk

    @pl.when(m == 0)
    def _():
        dist_ref[...] = jnp.full((1, tp), jnp.inf, jnp.float32)
        idx_ref[...] = jnp.zeros((1, tp), jnp.int32)

    x = x_ref[...]                                     # [8, tp]
    base = m * tm
    row = jax.lax.broadcasted_iota(jnp.int32, (chunk, 1), 0)   # hoisted column iota

    def body(j, carry):
        dmin, imin = carry
        start = pl.multiple_of(j * chunk, chunk)
        c_chunk = c_ref[pl.ds(start, chunk), :]        # [chunk, 8]
        s = jnp.dot(c_chunk, x,
                    preferred_element_type=jnp.float32)        # [chunk, tp] (MXU)
        # fused min/argmin over the chunk (stays in vregs)
        dmin_c = jnp.min(s, axis=0, keepdims=True)             # [1, tp]
        imin_c = jnp.min(jnp.where(s <= dmin_c, row, chunk),
                         axis=0, keepdims=True)                # lowest row on ties
        gidx = imin_c + (base + start)
        # strict '<' keeps the globally lowest face index on cross-chunk ties
        better = dmin_c < dmin
        imin = jnp.where(better, gidx, imin)
        dmin = jnp.minimum(dmin_c, dmin)
        return dmin, imin

    dmin, imin = jax.lax.fori_loop(
        0, n_chunks, body, (dist_ref[...], idx_ref[...]),
        unroll=min(8, n_chunks))

    idx_ref[...] = imin

    @pl.when(m != last)
    def _():
        dist_ref[...] = dmin

    @pl.when(m == last)
    def _():
        dist_ref[...] = jnp.maximum(dmin + x2_ref[...], 0.0)


def _prep_centers(centers, chunk=_KNN_CHUNK, tm_max=_KNN_TM_MAX):
    """Build the padded augmented center matrix once: [-2*c | ||c||^2 | 0...].

    Padded (fake) centers carry a huge squared norm so they can never win."""
    M = centers.shape[0]
    c = centers.astype(jnp.float32)
    tm = min(tm_max, _round_up(max(M, 1), chunk))
    Mp = _round_up(max(M, 1), tm)
    c_aug = jnp.zeros((Mp, 8), jnp.float32)
    c_aug = c_aug.at[:, 3].set(1e30)
    c_aug = c_aug.at[:M, :3].set(-2.0 * c)
    c_aug = c_aug.at[:M, 3].set(jnp.sum(c * c, axis=-1))
    return c_aug, tm


def _knn_nearest_aug(points, c_aug, *, tm, chunk=_KNN_CHUNK):
    """points: [P, 3] f32, c_aug: [Mp, 8] -> (sq_dist [P] f32, idx [P] int32)."""
    P = points.shape[0]
    Mp = c_aug.shape[0]

    tp = min(_KNN_TP_MAX, _round_up(max(P, 1), 128))
    Pp = _round_up(max(P, 1), tp)
    if Pp // tp < 2 and Pp >= 256:          # let both v7x TensorCores get a tile
        tp = _round_up(Pp // 2, 128)
        Pp = _round_up(max(P, 1), tp)

    x = points.astype(jnp.float32)
    x_aug = jnp.zeros((8, Pp), jnp.float32)
    x_aug = x_aug.at[:3, :P].set(x.T)
    x_aug = x_aug.at[3, :P].set(1.0)
    x2 = jnp.zeros((1, Pp), jnp.float32).at[0, :P].set(jnp.sum(x * x, axis=-1))

    cost = pl.CostEstimate(
        flops=2 * Pp * Mp * 8,
        transcendentals=0,
        bytes_accessed=4 * (8 * Pp + (Pp // tp) * Mp * 128 + 3 * Pp),
    )

    dist, idx = pl.pallas_call(
        functools.partial(_knn_kernel, chunk=chunk),
        grid=(Pp // tp, Mp // tm),
        in_specs=[
            pl.BlockSpec((8, tp), lambda i, m: (0, i)),
            pl.BlockSpec((tm, 8), lambda i, m: (m, 0)),
            pl.BlockSpec((1, tp), lambda i, m: (0, i)),
        ],
        out_specs=[
            pl.BlockSpec((1, tp), lambda i, m: (0, i)),
            pl.BlockSpec((1, tp), lambda i, m: (0, i)),
        ],
        out_shape=[
            jax.ShapeDtypeStruct((1, Pp), jnp.float32),
            jax.ShapeDtypeStruct((1, Pp), jnp.int32),
        ],
        compiler_params=pltpu.CompilerParams(
            dimension_semantics=("parallel", "arbitrary")),
        cost_estimate=cost,
    )(x_aug, c_aug, x2)
    return dist[0, :P], idx[0, :P]


def knn_nearest(points, centers):
    """Convenience wrapper: points [P, 3], centers [M, 3]."""
    c_aug, tm = _prep_centers(centers)
    return _knn_nearest_aug(points, c_aug, tm=tm)


# --------------------------------------------------------------------------
# Kernel 2: fused barycentric interpolation (_interp_bary) for one or more
# per-face attribute sets, with optional L2 normalization (F.normalize,
# eps=1e-12) applied per attribute (used by retrieve_normals).
#
# Packed slab layout [3*sum(D_k) + 2, P] (points in lanes):
#   for each attribute k: rows [off : off+D)    v0^T
#                         rows [off+D : off+2D) v1^T
#                         rows [off+2D: off+3D) v2^T
#   last two rows: w0^T, w1^T
# --------------------------------------------------------------------------
def _interp_multi_kernel(slab_ref, *out_refs, dims, norms):
    s = slab_ref[...]                               # [R, tp]
    w0 = s[-2:-1, :]                                # [1, tp]
    w1 = s[-1:, :]                                  # [1, tp]
    w2 = 1.0 - w0 - w1                              # bary = [w0, w1, 1 - w0 - w1]
    off = 0
    for out_ref, d, do_norm in zip(out_refs, dims, norms):
        v0 = s[off:off + d]
        v1 = s[off + d:off + 2 * d]
        v2 = s[off + 2 * d:off + 3 * d]
        out = v0 * w0 + v1 * w1 + v2 * w2           # [d, tp]
        if do_norm:
            ss = jnp.sum(out * out, axis=0, keepdims=True)
            out = out * jax.lax.rsqrt(jnp.maximum(ss, 1e-24))   # EUP rsqrt
        out_ref[...] = out
        off += 3 * d


def _interp_bary_multi(tri_attrs, spt_vw, norms):
    """tri_attrs: list of [P, 3, D_k]; spt_vw: [P, 2] -> list of [P, D_k]."""
    P = spt_vw.shape[0]
    dims = tuple(int(a.shape[-1]) for a in tri_attrs)
    R = 3 * sum(dims) + 2

    tp = min(8192, _round_up(max(P, 1), 128))
    Pp = _round_up(max(P, 1), tp)
    if Pp // tp < 2 and Pp >= 256:          # >= 2 tiles for v7x dual TC
        tp = _round_up(Pp // 2, 128)
        Pp = _round_up(max(P, 1), tp)

    # single packed, transposed slab (one DMA stream, lane-dense)
    rows = [jnp.transpose(a.astype(jnp.float32), (1, 2, 0)).reshape(3 * d, P)
            for a, d in zip(tri_attrs, dims)]
    packed = jnp.concatenate(rows + [spt_vw.astype(jnp.float32).T], axis=0)
    slab = jnp.pad(packed, ((0, 0), (0, Pp - P)))

    outs = pl.pallas_call(
        functools.partial(_interp_multi_kernel, dims=dims, norms=tuple(norms)),
        grid=(Pp // tp,),
        in_specs=[pl.BlockSpec((R, tp), lambda i: (0, i))],
        out_specs=[pl.BlockSpec((d, tp), lambda i: (0, i)) for d in dims],
        out_shape=[jax.ShapeDtypeStruct((d, Pp), jnp.float32) for d in dims],
        compiler_params=pltpu.CompilerParams(dimension_semantics=("parallel",)),
    )(slab)
    return [o[:, :P].T for o in outs]


# --------------------------------------------------------------------------
# Module port.
# --------------------------------------------------------------------------
class PhongSurfacePy3d:
    def __init__(self, V, F, N, TC=None, FTC=None, lambda_N=0.01,
                 outer_loop=2, inner_loop=50, max_dist=0.1, verbose=False):
        self.V = jnp.asarray(V, jnp.float32)
        self.F = jnp.asarray(F, jnp.int32)
        self.N = jnp.asarray(N, jnp.float32)
        self.TC = None if TC is None else jnp.asarray(TC, jnp.float32)
        self.FTC = None if FTC is None else jnp.asarray(FTC, jnp.int32)
        self.lambda_N = lambda_N
        self.outer_loop = outer_loop
        self.inner_loop = inner_loop
        self.max_dist = max_dist
        self.verbose = verbose
        # F_centers = V[F].mean(dim=1)  (gather + mean is plain-JAX glue)
        self.F_centers = self.V[self.F].mean(axis=1)
        # augmented/padded center matrix for the KNN kernel, built once
        self._c_aug, self._knn_tm = _prep_centers(self.F_centers)

    # forward: xyz [b, n, 3] -> (spt_fidx [b, n], spt_vw [b, n, 2], outlier_mask [b, n])
    def __call__(self, V, N=None):
        return self.find_corres_spt(V, N=N)

    def find_corres_spt(self, x, N=None):
        spt_fidx, spt_vw, outlier_mask = self.init_corres_spt(x)
        # TODO(synk): update_corres_spt (triwalk C++ extension + Adagrad/autograd
        # inner optimisation in solve_delta_vw) has no clean Pallas equivalent;
        # valid points keep their barycentric initialisation (1/3, 1/3).
        return spt_fidx, spt_vw, outlier_mask

    def init_corres_spt(self, x):
        b, n, _ = x.shape
        pts = x.reshape(b * n, 3)
        dist_sq, idx = _knn_nearest_aug(pts, self._c_aug, tm=self._knn_tm)
        # pytorch3d knn_points returns *squared* distances; the reference code
        # compares them directly against max_dist, so we do the same.
        outlier_mask = dist_sq.reshape(b, n) > self.max_dist
        spt_fidx = idx.reshape(b, n)                          # int32 (vs int64 in torch)
        spt_vw = jnp.full((b, n, 2), 1.0 / 3.0, jnp.float32)
        return spt_fidx, spt_vw, outlier_mask

    def retrieve_vertices(self, spt_fidx, spt_vw):
        lead = spt_vw.shape[:-1]
        tri_V = self.V[self.F[spt_fidx.reshape(-1)]]          # [P, 3, 3] gather (glue)
        (out,) = _interp_bary_multi([tri_V], spt_vw.reshape(-1, 2), [False])
        return out.reshape(lead + (3,))

    def retrieve_normals(self, spt_fidx, spt_vw):
        lead = spt_vw.shape[:-1]
        tri_N = self.N[self.F[spt_fidx.reshape(-1)]]          # [P, 3, 3] gather (glue)
        (out,) = _interp_bary_multi([tri_N], spt_vw.reshape(-1, 2), [True])
        return out.reshape(lead + (3,))

    def retrieve_tc(self, spt_fidx, spt_vw):
        if self.TC is None or self.FTC is None:
            return None
        lead = spt_vw.shape[:-1]
        tri_TC = self.TC[self.FTC[spt_fidx.reshape(-1)]]      # [P, 3, 2] gather (glue)
        (out,) = _interp_bary_multi([tri_TC], spt_vw.reshape(-1, 2), [False])
        return out.reshape(lead + (2,))

    def retrieve_all(self, spt_fidx, spt_vw):
        """Fused retrieval of (vertices, normals, tc) in a single pallas_call."""
        lead = spt_vw.shape[:-1]
        fidx = spt_fidx.reshape(-1)
        vw = spt_vw.reshape(-1, 2)
        tri_F = self.F[fidx]
        attrs = [self.V[tri_F], self.N[tri_F]]
        norms = [False, True]
        have_tc = self.TC is not None and self.FTC is not None
        if have_tc:
            attrs.append(self.TC[self.FTC[fidx]])
            norms.append(False)
        outs = _interp_bary_multi(attrs, vw, norms)
        out_V = outs[0].reshape(lead + (self.V.shape[-1],))
        out_N = outs[1].reshape(lead + (self.N.shape[-1],))
        out_TC = outs[2].reshape(lead + (self.TC.shape[-1],)) if have_tc else None
        return out_V, out_N, out_TC


if __name__ == "__main__":
    key = jax.random.PRNGKey(0)
    kV, kF, kN, kTC, kSel, kNoise = jax.random.split(key, 6)

    n_verts, n_faces = 32, 48
    V = 0.5 * jax.random.normal(kV, (n_verts, 3), jnp.float32)
    F = jax.random.randint(kF, (n_faces, 3), 0, n_verts, dtype=jnp.int32)
    N = jax.random.normal(kN, (n_verts, 3), jnp.float32)
    N = N / jnp.linalg.norm(N, axis=-1, keepdims=True)
    TC = jax.random.uniform(kTC, (n_verts, 2), jnp.float32)
    FTC = F

    surf = PhongSurfacePy3d(V, F, N, TC=TC, FTC=FTC)

    # query points near face centers (mostly inliers), shape [b, n, 3]
    b, n = 2, 8
    sel = jax.random.randint(kSel, (b, n), 0, n_faces, dtype=jnp.int32)
    x = surf.F_centers[sel] + 0.05 * jax.random.normal(kNoise, (b, n, 3), jnp.float32)

    spt_fidx, spt_vw, outlier_mask = surf(x)
    corres_V, corres_N, corres_TC = surf.retrieve_all(spt_fidx, spt_vw)
    corres_V_single = surf.retrieve_vertices(spt_fidx, spt_vw)

    jax.block_until_ready((spt_fidx, spt_vw, outlier_mask,
                           corres_V, corres_N, corres_TC, corres_V_single))

    # shape checks
    assert spt_fidx.shape == (b, n)
    assert spt_vw.shape == (b, n, 2)
    assert outlier_mask.shape == (b, n)
    assert corres_V.shape == (b, n, 3)
    assert corres_N.shape == (b, n, 3)
    assert corres_TC.shape == (b, n, 2)

    # KNN correctness vs a plain-JAX reference (tie-robust)
    pts = x.reshape(-1, 3)
    d2_ref = jnp.sum((pts[:, None, :] - surf.F_centers[None, :, :]) ** 2, axis=-1)
    best_ref = jnp.min(d2_ref, axis=1)
    dist_k, idx_k = knn_nearest(pts, surf.F_centers)
    assert bool(jnp.allclose(dist_k, best_ref, atol=1e-4))
    picked = d2_ref[jnp.arange(pts.shape[0]), idx_k]
    assert bool(jnp.allclose(picked, best_ref, atol=1e-4))

    # interp correctness / consistency
    assert bool(jnp.allclose(corres_V, corres_V_single, atol=1e-5))
    assert bool(jnp.all(jnp.abs(jnp.linalg.norm(corres_N, axis=-1) - 1.0) < 1e-3))
    assert bool(jnp.all(jnp.abs(spt_vw - 1.0 / 3.0) < 1e-6))

    print("KERNEL_OK")
</pallas_src>

<mosaic_0001>
module attributes {stable_mosaic.version = 11 : i64} {
  func.func @_knn_kernel(%arg0: i32, %arg1: i32, %arg2: memref<8x128xf32, #tpu.memory_space<vmem>>, %arg3: memref<64x8xf32, #tpu.memory_space<vmem>>, %arg4: memref<1x128xf32, #tpu.memory_space<vmem>>, %arg5: memref<1x128xf32, #tpu.memory_space<vmem>>, %arg6: memref<1x128xi32, #tpu.memory_space<vmem>>) attributes {dimension_semantics = [#tpu.dimension_semantics<parallel>, #tpu.dimension_semantics<arbitrary>], iteration_bounds = array<i64: 1, 1>, scalar_prefetch = 0 : i64, scratch_operands = 0 : i64, tpu.core_type = #tpu.core_type<tc>, window_params = [{transform_indices = @transform_0, window_bounds = array<i64: 8, 128>}, {transform_indices = @transform_1, window_bounds = array<i64: 64, 8>}, {transform_indices = @transform_2, window_bounds = array<i64: 1, 128>}, {transform_indices = @transform_3, window_bounds = array<i64: 1, 128>}, {transform_indices = @transform_4, window_bounds = array<i64: 1, 128>}]} {
    %c0_i32 = arith.constant 0 : i32
    %0 = arith.cmpi eq, %arg1, %c0_i32 : i32
    %1 = arith.extui %0 : i1 to i32
    %c0_i32_0 = arith.constant 0 : i32
    %2 = arith.cmpi ne, %1, %c0_i32_0 : i32
    scf.if %2 {
      %cst_23 = arith.constant 0x7F800000 : f32
      %57 = vector.broadcast %cst_23 : f32 to vector<1x128xf32>
      %c0_24 = arith.constant 0 : index
      %c0_25 = arith.constant 0 : index
      %58 = vector.load %arg5[%c0_24, %c0_25] : memref<1x128xf32, #tpu.memory_space<vmem>>, vector<1x128xf32>
      tpu.vector_store %arg5[%c0_24, %c0_25], %57 {strides = array<i32>} : memref<1x128xf32, #tpu.memory_space<vmem>>, vector<1x128xf32>,
      %c0_i32_26 = arith.constant 0 : i32
      %59 = vector.broadcast %c0_i32_26 : i32 to vector<1x128xi32>
      %c0_27 = arith.constant 0 : index
      %c0_28 = arith.constant 0 : index
      %60 = vector.load %arg6[%c0_27, %c0_28] : memref<1x128xi32, #tpu.memory_space<vmem>>, vector<1x128xi32>
      tpu.vector_store %arg6[%c0_27, %c0_28], %59 {strides = array<i32>} : memref<1x128xi32, #tpu.memory_space<vmem>>, vector<1x128xi32>,
    } else {
    }
    %c0 = arith.constant 0 : index
    %c0_1 = arith.constant 0 : index
    %3 = vector.load %arg2[%c0, %c0_1] : memref<8x128xf32, #tpu.memory_space<vmem>>, vector<8x128xf32>
    %c64_i32 = arith.constant 64 : i32
    %4 = arith.muli %arg1, %c64_i32 : i32
    %5 = tpu.iota {dimensions = array<i32: 0>} : vector<32x1xi32>
    %c0_2 = arith.constant 0 : index
    %c0_3 = arith.constant 0 : index
    %6 = vector.load %arg5[%c0_2, %c0_3] : memref<1x128xf32, #tpu.memory_space<vmem>>, vector<1x128xf32>
    %c0_4 = arith.constant 0 : index
    %c0_5 = arith.constant 0 : index
    %7 = vector.load %arg6[%c0_4, %c0_5] : memref<1x128xi32, #tpu.memory_space<vmem>>, vector<1x128xi32>
    %c0_i32_6 = arith.constant 0 : i32
    %c32_i32 = arith.constant 32 : i32
    %8 = arith.muli %c0_i32_6, %c32_i32 : i32
    %9 = tpu.assume_multiple %8, 32 : i32
    %10 = arith.index_cast %9 : i32 to index
    %c0_7 = arith.constant 0 : index
    %11 = vector.load %arg3[%10, %c0_7] : memref<64x8xf32, #tpu.memory_space<vmem>>, vector<32x8xf32>
    %cst = arith.constant dense<0.000000e+00> : vector<32x128xf32>
    %12 = tpu.matmul %11, %3, %cst {dimension_numbers = #tpu.dot_dimension_numbers<[1], [0], [0], [1], [0, 0, 1, 1], [], []>} : vector<32x8xf32>, vector<8x128xf32>, vector<32x128xf32> -> vector<32x128xf32>
    %cst_8 = arith.constant dense<0x7F800000> : vector<128xf32>
    %13 = vector.multi_reduction <minimumf>, %12, %cst_8 [0] : vector<32x128xf32> to vector<128xf32>
    %14 = vector.shape_cast %13 : vector<128xf32> to vector<1x128xf32>
    %15 = vector.broadcast %14 : vector<1x128xf32> to vector<32x128xf32>
    %16 = arith.cmpf ole, %12, %15 : vector<32x128xf32>
    %c32_i32_9 = arith.constant 32 : i32
    %17 = vector.shape_cast %5 : vector<32x1xi32> to vector<32x1xi32>
    %18 = vector.broadcast %17 : vector<32x1xi32> to vector<32x128xi32>
    %19 = vector.broadcast %c32_i32_9 : i32 to vector<32x128xi32>
    %20 = arith.select %16, %18, %19 : vector<32x128xi1>, vector<32x128xi32>
    %cst_10 = arith.constant dense<2147483647> : vector<128xi32>
    %21 = vector.multi_reduction <minsi>, %20, %cst_10 [0] : vector<32x128xi32> to vector<128xi32>
    %22 = vector.shape_cast %21 : vector<128xi32> to vector<1x128xi32>
    %23 = arith.addi %4, %9 : i32
    %24 = vector.broadcast %23 : i32 to vector<1x128xi32>
    %25 = arith.addi %22, %24 : vector<1x128xi32>
    %26 = arith.cmpf olt, %14, %6 : vector<1x128xf32>
    %27 = arith.select %26, %25, %7 : vector<1x128xi1>, vector<1x128xi32>
    %28 = arith.minimumf %14, %6 : vector<1x128xf32>
    %c1_i32 = arith.constant 1 : i32
    %c32_i32_11 = arith.constant 32 : i32
    %29 = arith.muli %c1_i32, %c32_i32_11 : i32
    %30 = tpu.assume_multiple %29, 32 : i32
    %31 = arith.index_cast %30 : i32 to index
    %c0_12 = arith.constant 0 : index
    %32 = vector.load %arg3[%31, %c0_12] : memref<64x8xf32, #tpu.memory_space<vmem>>, vector<32x8xf32>
    %cst_13 = arith.constant dense<0.000000e+00> : vector<32x128xf32>
    %33 = tpu.matmul %32, %3, %cst_13 {dimension_numbers = #tpu.dot_dimension_numbers<[1], [0], [0], [1], [0, 0, 1, 1], [], []>} : vector<32x8xf32>, vector<8x128xf32>, vector<32x128xf32> -> vector<32x128xf32>
    %cst_14 = arith.constant dense<0x7F800000> : vector<128xf32>
    %34 = vector.multi_reduction <minimumf>, %33, %cst_14 [0] : vector<32x128xf32> to vector<128xf32>
    %35 = vector.shape_cast %34 : vector<128xf32> to vector<1x128xf32>
    %36 = vector.broadcast %35 : vector<1x128xf32> to vector<32x128xf32>
    %37 = arith.cmpf ole, %33, %36 : vector<32x128xf32>
    %c32_i32_15 = arith.constant 32 : i32
    %38 = vector.shape_cast %5 : vector<32x1xi32> to vector<32x1xi32>
    %39 = vector.broadcast %38 : vector<32x1xi32> to vector<32x128xi32>
    %40 = vector.broadcast %c32_i32_15 : i32 to vector<32x128xi32>
    %41 = arith.select %37, %39, %40 : vector<32x128xi1>, vector<32x128xi32>
    %cst_16 = arith.constant dense<2147483647> : vector<128xi32>
    %42 = vector.multi_reduction <minsi>, %41, %cst_16 [0] : vector<32x128xi32> to vector<128xi32>
    %43 = vector.shape_cast %42 : vector<128xi32> to vector<1x128xi32>
    %44 = arith.addi %4, %30 : i32
    %45 = vector.broadcast %44 : i32 to vector<1x128xi32>
    %46 = arith.addi %43, %45 : vector<1x128xi32>
    %47 = arith.cmpf olt, %35, %28 : vector<1x128xf32>
    %48 = arith.select %47, %46, %27 : vector<1x128xi1>, vector<1x128xi32>
    %49 = arith.minimumf %35, %28 : vector<1x128xf32>
    %c2_i32 = arith.constant 2 : i32
    %c0_17 = arith.constant 0 : index
    %c0_18 = arith.constant 0 : index
    %50 = vector.load %arg6[%c0_17, %c0_18] : memref<1x128xi32, #tpu.memory_space<vmem>>, vector<1x128xi32>
    tpu.vector_store %arg6[%c0_17, %c0_18], %48 {strides = array<i32>} : memref<1x128xi32, #tpu.memory_space<vmem>>, vector<1x128xi32>,
    %c0_i32_19 = arith.constant 0 : i32
    %51 = arith.cmpi ne, %arg1, %c0_i32_19 : i32
    %52 = arith.extui %51 : i1 to i32
    %c0_i32_20 = arith.constant 0 : i32
    %53 = arith.cmpi ne, %52, %c0_i32_20 : i32
    scf.if %53 {
      %c0_23 = arith.constant 0 : index
      %c0_24 = arith.constant 0 : index
      %57 = vector.load %arg5[%c0_23, %c0_24] : memref<1x128xf32, #tpu.memory_space<vmem>>, vector<1x128xf32>
      tpu.vector_store %arg5[%c0_23, %c0_24], %49 {strides = array<i32>} : memref<1x128xf32, #tpu.memory_space<vmem>>, vector<1x128xf32>,
    } else {
    }
    %c0_i32_21 = arith.constant 0 : i32
    %54 = arith.cmpi eq, %arg1, %c0_i32_21 : i32
    %55 = arith.extui %54 : i1 to i32
    %c0_i32_22 = arith.constant 0 : i32
    %56 = arith.cmpi ne, %55, %c0_i32_22 : i32
    scf.if %56 {
      %c0_23 = arith.constant 0 : index
      %c0_24 = arith.constant 0 : index
      %57 = vector.load %arg4[%c0_23, %c0_24] : memref<1x128xf32, #tpu.memory_space<vmem>>, vector<1x128xf32>
      %58 = arith.addf %49, %57 : vector<1x128xf32>
      %cst_25 = arith.constant 0.000000e+00 : f32
      %59 = vector.broadcast %cst_25 : f32 to vector<1x128xf32>
      %60 = arith.maximumf %58, %59 : vector<1x128xf32>
      %c0_26 = arith.constant 0 : index
      %c0_27 = arith.constant 0 : index
      %61 = vector.load %arg5[%c0_26, %c0_27] : memref<1x128xf32, #tpu.memory_space<vmem>>, vector<1x128xf32>
      tpu.vector_store %arg5[%c0_26, %c0_27], %60 {strides = array<i32>} : memref<1x128xf32, #tpu.memory_space<vmem>>, vector<1x128xf32>,
    } else {
    }
    return
  }
  func.func @transform_0(%arg0: i32, %arg1: i32) -> (i32, i32) {
    %c0_i32 = arith.constant 0 : i32
    %c0_i32_0 = arith.constant 0 : i32
    return %c0_i32, %arg0 : i32, i32
  }
  func.func @transform_1(%arg0: i32, %arg1: i32) -> (i32, i32) {
    %c0_i32 = arith.constant 0 : i32
    %c0_i32_0 = arith.constant 0 : i32
    return %arg1, %c0_i32 : i32, i32
  }
  func.func @transform_2(%arg0: i32, %arg1: i32) -> (i32, i32) {
    %c0_i32 = arith.constant 0 : i32
    %c0_i32_0 = arith.constant 0 : i32
    return %c0_i32, %arg0 : i32, i32
  }
  func.func @transform_3(%arg0: i32, %arg1: i32) -> (i32, i32) {
    %c0_i32 = arith.constant 0 : i32
    %c0_i32_0 = arith.constant 0 : i32
    return %c0_i32, %arg0 : i32, i32
  }
  func.func @transform_4(%arg0: i32, %arg1: i32) -> (i32, i32) {
    %c0_i32 = arith.constant 0 : i32
    %c0_i32_0 = arith.constant 0 : i32
    return %c0_i32, %arg0 : i32, i32
  }
}

</mosaic_0001>

<llo_original>
// kernel: tpu_custom_call.1
$region0: #{tpu_custom_call.1}
  #allocation0 [shape = 'u32[]', space=smem, size = 0x4, offset = 0x4, fixed_abs, tag = 'smem constant byte address 0x4 - core index']
  #allocation1 [shape = 'u32[144,128]{1,0:T(1,128)}', space=vmem, size = 0x12000, scoped, tag = 'internal scratch']
  %s0 = inlined_call_operand.vmem [shape: f32[8,128], index: 0, kind: input, shape index: {}]
  %s1 = inlined_call_operand.vmem [shape: f32[64,8], index: 1, kind: input, shape index: {}]
  %s2 = inlined_call_operand.vmem [shape: f32[1,128], index: 2, kind: input, shape index: {}]
  %s3 = inlined_call_operand.hbm [shape: f32[1,128], index: 3, kind: output, shape index: {0}]
  %s4 = inlined_call_operand.hbm [shape: s32[1,128], index: 4, kind: output, shape index: {1}]
  %5 = xla_tuple %s3, %s4
  %s6 = sld [smem:[#allocation0]]
  $region42: #{tpu_custom_call.1} parent=0
    _
  %s8 = ssub.s32 1, %s6
  %s9 = scalar_select 0, %s8, %s6
  $region1: #{tpu_custom_call.1} parent=0
    #allocation2 [shape = 'u8[512]{0}', space=vmem, size = 0x400, scoped, tag = 'output window, operand 0, single buffered']
    #allocation3 [shape = 's32[1]{0}', space=sflag, size = 0x4, scoped, tag = 'scoped memory for tpu_custom_call.1']
    #allocation4 [shape = 'u8[512]{0}', space=vmem, size = 0x400, scoped, tag = 'output window, operand 1, single buffered']
    #allocation5 [shape = 's32[1]{0}', space=sflag, size = 0x4, scoped, tag = 'scoped memory for tpu_custom_call.1']
    %10 = vsyncpa [#allocation3], 0
    %11 = vsyncpa [#allocation5], 0
    // Predicated region
    $region2: #{tpu_custom_call.1} parent=1 // pred_check
      _
    $region3: #{tpu_custom_call.1} parent=1 // pred_check_branch
      %13 = sbr.rel (0) target = $region5
    $region4: #{tpu_custom_call.1} parent=1 // pred_region
      _
    $region5: #{tpu_custom_call.1} parent=1 // pred_fallthru
      _
    // Predicated region
    $region6: #{tpu_custom_call.1} parent=1 // pred_check
      _
    $region7: #{tpu_custom_call.1} parent=1 // pred_check_branch
      %15 = sbr.rel (0) target = $region9
    $region8: #{tpu_custom_call.1} parent=1 // pred_region
      _
    $region9: #{tpu_custom_call.1} parent=1 // pred_fallthru
      _
    // Predicated region
    $region10: #{tpu_custom_call.1} parent=1 // pred_check
      _
    $region11: #{tpu_custom_call.1} parent=1 // pred_check_branch
      %17 = sbr.rel (0) target = $region13
    $region12: #{tpu_custom_call.1} parent=1 // pred_region
      _
    $region13: #{tpu_custom_call.1} parent=1 // pred_fallthru
      _
    %p18 = scmp.eq.s32.totalorder 0, 0
    // Predicated region
    $region14: #{tpu_custom_call.1} parent=1 // pred_check
      %p19 = pneg %p18
    $region15: #{tpu_custom_call.1} parent=1 // pred_check_branch
      %21 = sbr.rel (%p19) target = $region17
    $region16: #{tpu_custom_call.1} parent=1 // pred_region
      %22 = vst [vmem:[#allocation2] sm:$0x1] inf
      %23 = vst [vmem:[#allocation4] sm:$0x1] 0
    $region17: #{tpu_custom_call.1} parent=1 // pred_fallthru
      _
    %v24 = vld [vmem:[%s0] sm:$0xff]
    %s25 = smul.u32 0, 64
    %v26 = vlaneseq
    %v27 = vshrl.u32 %v26, 7
    %v28 = vadd.s32 %v27, 8
    %v29 = vadd.s32 %v27, 16
    %v30 = vadd.s32 %v27, 24
    %v31 = vld [vmem:[#allocation2] sm:$0x1]
    %v32 = vld [vmem:[#allocation4] sm:$0x1]
    %v33 = vld [vmem:[%s1] sm:$0xff]
    %v34 = vld [vmem:[%s1 + $0x8] sm:$0xff]
    %v35 = vld [vmem:[%s1 + $0x10] sm:$0xff]
    %v36 = vld [vmem:[%s1 + $0x18] sm:$0xff]
    %vm37 = vcmask 64512
    %v39 = vsel %vm37, %v33, 0
    %v42 = vsel %vm37, %v34, 0
    %v45 = vsel %vm37, %v35, 0
    %v48 = vsel %vm37, %v36, 0
    %50 = vmatprep.subr.mxu0 0.0
    %51 = vmatpush1.msra.mxu0 %v24
    %52 = vmatprep.subr.mxu0 0.0
    %53 = vmatpush1.msra.mxu0 0.0
    %54 = vmatprep.subr.mxu0 0.0
    %55 = vmatpush1.msra.mxu0 0.0
    %56 = vmatprep.subr.mxu0 0.0
    %57 = vmatpush1.msra.mxu0 0.0
    %58 = vmatprep.subr.mxu0 0.0
    %59 = vmatpush1.msra.mxu0 0.0
    %60 = vmatprep.subr.mxu0 0.0
    %61 = vmatpush1.msra.mxu0 0.0
    %62 = vmatprep.subr.mxu0 0.0
    %63 = vmatpush1.msra.mxu0 0.0
    %64 = vmatprep.subr.mxu0 0.0
    %65 = vmatpush1.msra.mxu0 0.0
    %66 = vmatprep.subr.mxu0 0.0
    %67 = vmatpush1.msra.mxu0 0.0
    %68 = vmatprep.subr.mxu0 0.0
    %69 = vmatpush1.msra.mxu0 0.0
    %70 = vmatprep.subr.mxu0 0.0
    %71 = vmatpush1.msra.mxu0 0.0
    %72 = vmatprep.subr.mxu0 0.0
    %73 = vmatpush1.msra.mxu0 0.0
    %74 = vmatprep.subr.mxu0 0.0
    %75 = vmatpush1.msra.mxu0 0.0
    %76 = vmatprep.subr.mxu0 0.0
    %77 = vmatpush1.msra.mxu0 0.0
    %78 = vmatprep.subr.mxu0 0.0
    %79 = vmatpush1.msra.mxu0 0.0
    %80 = vmatprep.subr.mxu0 0.0
    %81 = vmatpush1.msra.mxu0 0.0
    %82 = vmatprep.subr.mxu0 0.0
    %83 = vmatpush1.msra.mxu0 0.0
    %84 = vmatprep.subr.mxu0 0.0
    %85 = vmatpush1.msra.mxu0 0.0
    %86 = vmatprep.subr.mxu0 0.0
    %87 = vmatpush1.msra.mxu0 0.0
    %88 = vmatprep.subr.mxu0 0.0
    %89 = vmatpush1.msra.mxu0 0.0
    %90 = vmatprep.subr.mxu0 0.0
    %91 = vmatpush1.msra.mxu0 0.0
    %92 = vmatprep.subr.mxu0 0.0
    %93 = vmatpush1.msra.mxu0 0.0
    %94 = vmatprep.subr.mxu0 0.0
    %95 = vmatpush1.msra.mxu0 0.0
    %96 = vmatprep.subr.mxu0 0.0
    %97 = vmatpush1.msra.mxu0 0.0
    %98 = vmatprep.subr.mxu0 0.0
    %99 = vmatpush1.msra.mxu0 0.0
    %100 = vmatprep.subr.mxu0 0.0
    %101 = vmatpush1.msra.mxu0 0.0
    %102 = vmatprep.subr.mxu0 0.0
    %103 = vmatpush1.msra.mxu0 0.0
    %104 = vmatprep.subr.mxu0 0.0
    %105 = vmatpush1.msra.mxu0 0.0
    %106 = vmatprep.subr.mxu0 0.0
    %107 = vmatpush1.msra.mxu0 0.0
    %108 = vmatprep.subr.mxu0 0.0
    %109 = vmatpush1.msra.mxu0 0.0
    %110 = vmatprep.subr.mxu0 0.0
    %111 = vmatpush1.msra.mxu0 0.0
    %112 = vmatprep.subr.mxu0 0.0
    %113 = vmatpush1.msra.mxu0 0.0
    %114 = vmatprep.mubr.f32.mxu0 0.0
    %115 = vmatmul.mubr.f32.gmra.mrb[0].mxu0 %v39
    %v116 = vpop.f32.mrb[0].mxu0
    %v117 = vadd.f32 0.0, %v116
    %v118 = vpop.f32.mrb[0].mxu0
    %119 = vmatprep.mubr.f32.mxu0 0.0
    %120 = vmatmul.mubr.f32.gmra.mrb[0].mxu0 %v42
    %v121 = vpop.f32.mrb[0].mxu0
    %v122 = vadd.f32 0.0, %v121
    %v123 = vpop.f32.mrb[0].mxu0
    %124 = vmatprep.mubr.f32.mxu0 0.0
    %125 = vmatmul.mubr.f32.gmra.mrb[0].mxu0 %v45
    %v126 = vpop.f32.mrb[0].mxu0
    %v127 = vadd.f32 0.0, %v126
    %v128 = vpop.f32.mrb[0].mxu0
    %129 = vmatprep.mubr.f32.mxu0 0.0
    %130 = vmatmul.mubr.f32.gmra.mrb[0].mxu0 %v48
    %v131 = vpop.f32.mrb[0].mxu0
    %v132 = vadd.f32 0.0, %v131
    %v133 = vpop.f32.mrb[0].mxu0
    %134 = vdwg.mxu0
    %v135 = vmin.f32 %v117, %v122
    %v136 = vmin.f32 %v127, %v132
    %v137 = vmin.f32 %v135, %v136
    %v138 = vrot.slane %v137, 4
    %v139 = vmin.f32 %v137, %v138
    %v140 = vrot.slane %v139, 2
    %v141 = vmin.f32 %v139, %v140
    %v142 = vrot.slane %v141, 1
    %v143 = vmin.f32 %v141, %v142
    %vm144 = vcmp.le.f32.partialorder %v117, %v143
    %vm145 = vcmp.le.f32.partialorder %v122, %v143
    %vm146 = vcmp.le.f32.partialorder %v127, %v143
    %vm147 = vcmp.le.f32.partialorder %v132, %v143
    %v148 = vsel %vm144, %v27, 32
    %v149 = vsel %vm145, %v28, 32
    %v150 = vsel %vm146, %v29, 32
    %v151 = vsel %vm147, %v30, 32
    %vm152 = vcmp.lt.s32.totalorder %v148, %v149
    %v153 = vsel %vm152, %v148, %v149
    %vm154 = vcmp.lt.s32.totalorder %v150, %v151
    %v155 = vsel %vm154, %v150, %v151
    %vm156 = vcmp.lt.s32.totalorder %v153, %v155
    %v157 = vsel %vm156, %v153, %v155
    %v158 = vrot.slane %v157, 4
    %vm159 = vcmp.lt.s32.totalorder %v157, %v158
    %v160 = vsel %vm159, %v157, %v158
    %v161 = vrot.slane %v160, 2
    %vm162 = vcmp.lt.s32.totalorder %v160, %v161
    %v163 = vsel %vm162, %v160, %v161
    %v164 = vrot.slane %v163, 1
    %vm165 = vcmp.lt.s32.totalorder %v163, %v164
    %v166 = vsel %vm165, %v163, %v164
    %s167 = sadd.s32 %s25, 0
    %v168 = vstv %s167
    %v169 = vadd.s32 %v166, %v168
    %vm170 = vcmp.lt.f32.partialorder %v143, %v31
    %v171 = vsel %vm170, %v169, %v32
    %v172 = vmin.f32 %v143, %v31
    %s173 = scalar_lea.vmem %s1, 32
    %v174 = vld [vmem:[%s173] sm:$0xff]
    %v175 = vld [vmem:[%s173 + $0x8] sm:$0xff]
    %v176 = vld [vmem:[%s173 + $0x10] sm:$0xff]
    %v177 = vld [vmem:[%s173 + $0x18] sm:$0xff]
    %v179 = vsel %vm37, %v174, 0
    %v182 = vsel %vm37, %v175, 0
    %v185 = vsel %vm37, %v176, 0
    %v188 = vsel %vm37, %v177, 0
    %190 = vmatprep.subr.mxu0 0.0
    %191 = vmatpush1.msra.mxu0 %v24
    %192 = vmatprep.subr.mxu0 0.0
    %193 = vmatpush1.msra.mxu0 0.0
    %194 = vmatprep.subr.mxu0 0.0
    %195 = vmatpush1.msra.mxu0 0.0
    %196 = vmatprep.subr.mxu0 0.0
    %197 = vmatpush1.msra.mxu0 0.0
    %198 = vmatprep.subr.mxu0 0.0
    %199 = vmatpush1.msra.mxu0 0.0
    %200 = vmatprep.subr.mxu0 0.0
    %201 = vmatpush1.msra.mxu0 0.0
    %202 = vmatprep.subr.mxu0 0.0
    %203 = vmatpush1.msra.mxu0 0.0
    %204 = vmatprep.subr.mxu0 0.0
    %205 = vmatpush1.msra.mxu0 0.0
    %206 = vmatprep.subr.mxu0 0.0
    %207 = vmatpush1.msra.mxu0 0.0
    %208 = vmatprep.subr.mxu0 0.0
    %209 = vmatpush1.msra.mxu0 0.0
    %210 = vmatprep.subr.mxu0 0.0
    %211 = vmatpush1.msra.mxu0 0.0
    %212 = vmatprep.subr.mxu0 0.0
    %213 = vmatpush1.msra.mxu0 0.0
    %214 = vmatprep.subr.mxu0 0.0
    %215 = vmatpush1.msra.mxu0 0.0
    %216 = vmatprep.subr.mxu0 0.0
    %217 = vmatpush1.msra.mxu0 0.0
    %218 = vmatprep.subr.mxu0 0.0
    %219 = vmatpush1.msra.mxu0 0.0
    %220 = vmatprep.subr.mxu0 0.0
    %221 = vmatpush1.msra.mxu0 0.0
    %222 = vmatprep.subr.mxu0 0.0
    %223 = vmatpush1.msra.mxu0 0.0
    %224 = vmatprep.subr.mxu0 0.0
    %225 = vmatpush1.msra.mxu0 0.0
    %226 = vmatprep.subr.mxu0 0.0
    %227 = vmatpush1.msra.mxu0 0.0
    %228 = vmatprep.subr.mxu0 0.0
    %229 = vmatpush1.msra.mxu0 0.0
    %230 = vmatprep.subr.mxu0 0.0
    %231 = vmatpush1.msra.mxu0 0.0
    %232 = vmatprep.subr.mxu0 0.0
    %233 = vmatpush1.msra.mxu0 0.0
    %234 = vmatprep.subr.mxu0 0.0
    %235 = vmatpush1.msra.mxu0 0.0
    %236 = vmatprep.subr.mxu0 0.0
    %237 = vmatpush1.msra.mxu0 0.0
    %238 = vmatprep.subr.mxu0 0.0
    %239 = vmatpush1.msra.mxu0 0.0
    %240 = vmatprep.subr.mxu0 0.0
    %241 = vmatpush1.msra.mxu0 0.0
    %242 = vmatprep.subr.mxu0 0.0
    %243 = vmatpush1.msra.mxu0 0.0
    %244 = vmatprep.subr.mxu0 0.0
    %245 = vmatpush1.msra.mxu0 0.0
    %246 = vmatprep.subr.mxu0 0.0
    %247 = vmatpush1.msra.mxu0 0.0
    %248 = vmatprep.subr.mxu0 0.0
    %249 = vmatpush1.msra.mxu0 0.0
    %250 = vmatprep.subr.mxu0 0.0
    %251 = vmatpush1.msra.mxu0 0.0
    %252 = vmatprep.subr.mxu0 0.0
    %253 = vmatpush1.msra.mxu0 0.0
    %254 = vmatprep.mubr.f32.mxu0 0.0
    %255 = vmatmul.mubr.f32.gmra.mrb[0].mxu0 %v179
    %v256 = vpop.f32.mrb[0].mxu0
    %v257 = vadd.f32 0.0, %v256
    %v258 = vpop.f32.mrb[0].mxu0
    %259 = vmatprep.mubr.f32.mxu0 0.0
    %260 = vmatmul.mubr.f32.gmra.mrb[0].mxu0 %v182
    %v261 = vpop.f32.mrb[0].mxu0
    %v262 = vadd.f32 0.0, %v261
    %v263 = vpop.f32.mrb[0].mxu0
    %264 = vmatprep.mubr.f32.mxu0 0.0
    %265 = vmatmul.mubr.f32.gmra.mrb[0].mxu0 %v185
    %v266 = vpop.f32.mrb[0].mxu0
    %v267 = vadd.f32 0.0, %v266
    %v268 = vpop.f32.mrb[0].mxu0
    %269 = vmatprep.mubr.f32.mxu0 0.0
    %270 = vmatmul.mubr.f32.gmra.mrb[0].mxu0 %v188
    %v271 = vpop.f32.mrb[0].mxu0
    %v272 = vadd.f32 0.0, %v271
    %v273 = vpop.f32.mrb[0].mxu0
    %274 = vdwg.mxu0
    %v275 = vmin.f32 %v257, %v262
    %v276 = vmin.f32 %v267, %v272
    %v277 = vmin.f32 %v275, %v276
    %v278 = vrot.slane %v277, 4
    %v279 = vmin.f32 %v277, %v278
    %v280 = vrot.slane %v279, 2
    %v281 = vmin.f32 %v279, %v280
    %v282 = vrot.slane %v281, 1
    %v283 = vmin.f32 %v281, %v282
    %vm284 = vcmp.le.f32.partialorder %v257, %v283
    %vm285 = vcmp.le.f32.partialorder %v262, %v283
    %vm286 = vcmp.le.f32.partialorder %v267, %v283
    %vm287 = vcmp.le.f32.partialorder %v272, %v283
    %v288 = vsel %vm284, %v27, 32
    %v289 = vsel %vm285, %v28, 32
    %v290 = vsel %vm286, %v29, 32
    %v291 = vsel %vm287, %v30, 32
    %vm292 = vcmp.lt.s32.totalorder %v288, %v289
    %v293 = vsel %vm292, %v288, %v289
    %vm294 = vcmp.lt.s32.totalorder %v290, %v291
    %v295 = vsel %vm294, %v290, %v291
    %vm296 = vcmp.lt.s32.totalorder %v293, %v295
    %v297 = vsel %vm296, %v293, %v295
    %v298 = vrot.slane %v297, 4
    %vm299 = vcmp.lt.s32.totalorder %v297, %v298
    %v300 = vsel %vm299, %v297, %v298
    %v301 = vrot.slane %v300, 2
    %vm302 = vcmp.lt.s32.totalorder %v300, %v301
    %v303 = vsel %vm302, %v300, %v301
    %v304 = vrot.slane %v303, 1
    %vm305 = vcmp.lt.s32.totalorder %v303, %v304
    %v306 = vsel %vm305, %v303, %v304
    %s307 = sadd.s32 %s25, 32
    %v308 = vstv %s307
    %v309 = vadd.s32 %v306, %v308
    %vm310 = vcmp.lt.f32.partialorder %v283, %v172
    %v311 = vsel %vm310, %v309, %v171
    %v312 = vmin.f32 %v283, %v172
    %313 = vst [vmem:[#allocation4] sm:$0x1] %v311
    %p314 = scmp.ne.s32.totalorder 0, 0
    // Predicated region
    $region18: #{tpu_custom_call.1} parent=1 // pred_check
      %p315 = pneg %p314
    $region19: #{tpu_custom_call.1} parent=1 // pred_check_branch
      %317 = sbr.rel (%p315) target = $region21
    $region20: #{tpu_custom_call.1} parent=1 // pred_region
      %318 = vst [vmem:[#allocation2] sm:$0x1] %v312
    $region21: #{tpu_custom_call.1} parent=1 // pred_fallthru
      _
    // Predicated region
    $region22: #{tpu_custom_call.1} parent=1 // pred_check
      %p319 = pneg %p18
    $region23: #{tpu_custom_call.1} parent=1 // pred_check_branch
      %321 = sbr.rel (%p319) target = $region25
    $region24: #{tpu_custom_call.1} parent=1 // pred_region
      %v322 = vld [vmem:[%s2] sm:$0x1]
      %v323 = vadd.f32 %v312, %v322
      %v324 = vmax.f32 %v323, 0.0
      %325 = vst [vmem:[#allocation2] sm:$0x1] %v324
    $region25: #{tpu_custom_call.1} parent=1 // pred_fallthru
      _
    // Predicated region
    $region26: #{tpu_custom_call.1} parent=1 // pred_check
      _
    $region27: #{tpu_custom_call.1} parent=1 // pred_check_branch
      %327 = sbr.rel (0) target = $region29
    $region28: #{tpu_custom_call.1} parent=1 // pred_region
      %s329 = ssub.s32 16, 16
      %330 = vsyncadd [#allocation3], %s329
      %s332 = sshll.u32 [#allocation2], 4
      %s333 = int_to_ptr.vmem [resolvable:$true] %s332
      %335 = dma.vmem_to_hbm [thread:$0]  %s333, 16, %s3, [#allocation3]
    $region29: #{tpu_custom_call.1} parent=1 // pred_fallthru
      _
    // Predicated region
    $region30: #{tpu_custom_call.1} parent=1 // pred_check
      _
    $region31: #{tpu_custom_call.1} parent=1 // pred_check_branch
      %337 = sbr.rel (0) target = $region33
    $region32: #{tpu_custom_call.1} parent=1 // pred_region
      %s339 = ssub.s32 16, 16
      %340 = vsyncadd [#allocation5], %s339
      %s342 = sshll.u32 [#allocation4], 4
      %s343 = int_to_ptr.vmem [resolvable:$true] %s342
      %345 = dma.vmem_to_hbm [thread:$0]  %s343, 16, %s4, [#allocation5]
    $region33: #{tpu_custom_call.1} parent=1 // pred_fallthru
      _
    // Predicated region
    $region34: #{tpu_custom_call.1} parent=1 // pred_check
      _
    $region35: #{tpu_custom_call.1} parent=1 // pred_check_branch
      %347 = sbr.rel (0) target = $region37
    $region36: #{tpu_custom_call.1} parent=1 // pred_region
      %348 = dma.done [#allocation3], 16
    $region37: #{tpu_custom_call.1} parent=1 // pred_fallthru
      _
    // Predicated region
    $region38: #{tpu_custom_call.1} parent=1 // pred_check
      _
    $region39: #{tpu_custom_call.1} parent=1 // pred_check_branch
      %350 = sbr.rel (0) target = $region41
    $region40: #{tpu_custom_call.1} parent=1 // pred_region
      %351 = dma.done [#allocation5], 16
    $region41: #{tpu_custom_call.1} parent=1 // pred_fallthru
      _
    %352 = vsyncpa [#allocation3], 1
    %353 = vsyncpa [#allocation5], 1

</llo_original>
